<compile_context>
chip_gen: v7x
topology: tpu7x:2x2x1
jax: 0.10.0
libtpu: 0.0.40
codegen_flags: <defaults>
</compile_context>

<pallas_src>
import jax
import jax.numpy as jnp
from jax import lax
from jax.experimental import pallas as pl
from jax.experimental.pallas import tpu as pltpu


def _disc_kernel(tmp_ref, hpl_ref, hmi_ref, o1_ref, o2_ref):
    # tmp_ref: (1, n_h)  (resident across the grid; index_map is constant)
    # hpl_ref / hmi_ref: (TN, n_h) tiles streamed from HBM
    # o1_ref / o2_ref:   (1, TN) lane-dense output tiles
    tmp = tmp_ref[...]

    # sc = tmp @ h_tile.T  -> contract the lane (feature) dims directly,
    # same "NT" dot_general pattern flash-attention uses for q @ k.T.
    o1_ref[...] = lax.dot_general(
        tmp, hpl_ref[...],
        dimension_numbers=(((1,), (1,)), ((), ())),
        preferred_element_type=jnp.float32,
    ).astype(o1_ref.dtype)

    o2_ref[...] = lax.dot_general(
        tmp, hmi_ref[...],
        dimension_numbers=(((1,), (1,)), ((), ())),
        preferred_element_type=jnp.float32,
    ).astype(o2_ref.dtype)


def discriminator_forward(c, h_pl, h_mi, w, b, s_bias1=None, s_bias2=None):
    """c: (n_h,)   h_pl/h_mi: (1, N, n_h) or (N, n_h)   w: (n_h, n_h)   b: (n_h,)

    Returns logits of shape (2N,), matching torch.cat((sc_1, sc_2)).
    """
    n_h = c.shape[-1]

    # Explicit reshape (NOT jnp.squeeze) so N == 1 does not collapse the row dim.
    hpl = jnp.reshape(h_pl, (-1, n_h))
    hmi = jnp.reshape(h_mi, (-1, n_h))
    N = hpl.shape[0]
    h_dtype = hpl.dtype

    # Hoisted GEMV: tmp = c @ W.T + b, computed once with plain XLA.
    c2 = jnp.reshape(c, (1, n_h)).astype(jnp.float32)
    tmp = c2 @ w.astype(jnp.float32).T + jnp.reshape(b, (1, n_h)).astype(jnp.float32)
    tmp = tmp.astype(h_dtype)  # match the streamed dtype (f32 stays f32, bf16 stays bf16)

    # TODO(synk): for tiny problems (N*n_h of a few KB) a plain-XLA path would avoid
    # the pallas_call launch overhead; kept on the Pallas path here per the spec.

    # Tile-size selection: ~4 MiB per input tile; tn_cap kept a multiple of 128.
    bytes_per_row = n_h * jnp.dtype(h_dtype).itemsize
    tile_budget = 4 * 1024 * 1024
    tn_cap = max(128, (tile_budget // max(1, bytes_per_row)) // 128 * 128)
    if N <= tn_cap:
        TN = N          # single tile; full-dim block satisfies layout rules
    else:
        TN = tn_cap     # multiple of 128; Pallas masks the partial edge tile

    grid = (pl.cdiv(N, TN),)

    out1, out2 = pl.pallas_call(
        _disc_kernel,
        out_shape=(
            jax.ShapeDtypeStruct((1, N), jnp.float32),
            jax.ShapeDtypeStruct((1, N), jnp.float32),
        ),
        grid=grid,
        in_specs=[
            pl.BlockSpec((1, n_h), lambda i: (0, 0)),   # tmp (resident across grid)
            pl.BlockSpec((TN, n_h), lambda i: (i, 0)),  # h_pl tile stream
            pl.BlockSpec((TN, n_h), lambda i: (i, 0)),  # h_mi tile stream
        ],
        out_specs=(
            pl.BlockSpec((1, TN), lambda i: (0, i)),    # sc_1 tile (lane-dense)
            pl.BlockSpec((1, TN), lambda i: (0, i)),    # sc_2 tile (lane-dense)
        ),
        compiler_params=pltpu.CompilerParams(
            dimension_semantics=("parallel",),
        ),
    )(tmp, hpl, hmi)

    sc_1 = out1[0]
    sc_2 = out2[0]
    if s_bias1 is not None:
        sc_1 = sc_1 + s_bias1
    if s_bias2 is not None:
        sc_2 = sc_2 + s_bias2
    return jnp.concatenate((sc_1, sc_2))                # (2N,)


def _reference(c, h_pl, h_mi, w, b):
    n_h = c.shape[-1]
    c2 = jnp.reshape(c, (1, n_h))
    hpl = jnp.reshape(h_pl, (-1, n_h))
    hmi = jnp.reshape(h_mi, (-1, n_h))
    tmp = c2 @ w.T + b
    sc_1 = jnp.squeeze(tmp @ hpl.T)
    sc_2 = jnp.squeeze(tmp @ hmi.T)
    return jnp.concatenate((sc_1, sc_2))


if __name__ == "__main__":
    n_h = 32   # hidden size
    N = 8      # number of nodes / sequence length

    key = jax.random.PRNGKey(0)
    k_c, k_pl, k_mi, k_w, k_b = jax.random.split(key, 5)

    # Deterministic parameter init (synthetic, matches Linear(n_h, n_h) shapes)
    bound = 1.0 / (n_h ** 0.5)
    w = jax.random.uniform(k_w, (n_h, n_h), jnp.float32, -bound, bound)
    b = jax.random.uniform(k_b, (n_h,), jnp.float32, -bound, bound)

    # Inputs consistent with the DGI Discriminator usage
    c = jax.random.normal(k_c, (n_h,), jnp.float32)
    h_pl = jax.random.normal(k_pl, (1, N, n_h), jnp.float32)
    h_mi = jax.random.normal(k_mi, (1, N, n_h), jnp.float32)

    logits = discriminator_forward(c, h_pl, h_mi, w, b)
    logits = jax.block_until_ready(logits)

    ref = _reference(c, h_pl, h_mi, w, b)
    assert logits.shape == (2 * N,)
    assert jnp.allclose(logits, ref, atol=1e-4, rtol=1e-4)

    print("KERNEL_OK")
</pallas_src>

<mosaic_0001>
module attributes {stable_mosaic.version = 11 : i64} {
  func.func @_disc_kernel(%arg0: i32, %arg1: memref<1x32xf32, #tpu.memory_space<vmem>>, %arg2: memref<8x32xf32, #tpu.memory_space<vmem>>, %arg3: memref<8x32xf32, #tpu.memory_space<vmem>>, %arg4: memref<1x8xf32, #tpu.memory_space<vmem>>, %arg5: memref<1x8xf32, #tpu.memory_space<vmem>>) attributes {dimension_semantics = [#tpu.dimension_semantics<parallel>], iteration_bounds = array<i64: 1>, scalar_prefetch = 0 : i64, scratch_operands = 0 : i64, tpu.core_type = #tpu.core_type<tc>, window_params = [{pipeline_mode = #tpu.pipeline_mode<synchronous>, transform_indices = @transform_0, window_bounds = array<i64: 1, 32>}, {transform_indices = @transform_1, window_bounds = array<i64: 8, 32>}, {transform_indices = @transform_2, window_bounds = array<i64: 8, 32>}, {transform_indices = @transform_3, window_bounds = array<i64: 1, 8>}, {transform_indices = @transform_4, window_bounds = array<i64: 1, 8>}]} {
    %c0 = arith.constant 0 : index
    %c0_0 = arith.constant 0 : index
    %0 = vector.load %arg1[%c0, %c0_0] : memref<1x32xf32, #tpu.memory_space<vmem>>, vector<1x32xf32>
    %c0_1 = arith.constant 0 : index
    %c0_2 = arith.constant 0 : index
    %1 = vector.load %arg2[%c0_1, %c0_2] : memref<8x32xf32, #tpu.memory_space<vmem>>, vector<8x32xf32>
    %cst = arith.constant dense<0.000000e+00> : vector<1x8xf32>
    %2 = tpu.matmul %0, %1, %cst {dimension_numbers = #tpu.dot_dimension_numbers<[1], [1], [0], [0], [0, 0, 1, 0], [], []>} : vector<1x32xf32>, vector<8x32xf32>, vector<1x8xf32> -> vector<1x8xf32>
    %c0_3 = arith.constant 0 : index
    %c0_4 = arith.constant 0 : index
    %3 = vector.load %arg4[%c0_3, %c0_4] : memref<1x8xf32, #tpu.memory_space<vmem>>, vector<1x8xf32>
    tpu.vector_store %arg4[%c0_3, %c0_4], %2 {strides = array<i32>} : memref<1x8xf32, #tpu.memory_space<vmem>>, vector<1x8xf32>,
    %c0_5 = arith.constant 0 : index
    %c0_6 = arith.constant 0 : index
    %4 = vector.load %arg3[%c0_5, %c0_6] : memref<8x32xf32, #tpu.memory_space<vmem>>, vector<8x32xf32>
    %cst_7 = arith.constant dense<0.000000e+00> : vector<1x8xf32>
    %5 = tpu.matmul %0, %4, %cst_7 {dimension_numbers = #tpu.dot_dimension_numbers<[1], [1], [0], [0], [0, 0, 1, 0], [], []>} : vector<1x32xf32>, vector<8x32xf32>, vector<1x8xf32> -> vector<1x8xf32>
    %c0_8 = arith.constant 0 : index
    %c0_9 = arith.constant 0 : index
    %6 = vector.load %arg5[%c0_8, %c0_9] : memref<1x8xf32, #tpu.memory_space<vmem>>, vector<1x8xf32>
    tpu.vector_store %arg5[%c0_8, %c0_9], %5 {strides = array<i32>} : memref<1x8xf32, #tpu.memory_space<vmem>>, vector<1x8xf32>,
    return
  }
  func.func @transform_0(%arg0: i32) -> (i32, i32) {
    %c0_i32 = arith.constant 0 : i32
    %c0_i32_0 = arith.constant 0 : i32
    %c0_i32_1 = arith.constant 0 : i32
    return %c0_i32, %c0_i32_0 : i32, i32
  }
  func.func @transform_1(%arg0: i32) -> (i32, i32) {
    %c0_i32 = arith.constant 0 : i32
    %c0_i32_0 = arith.constant 0 : i32
    return %arg0, %c0_i32 : i32, i32
  }
  func.func @transform_2(%arg0: i32) -> (i32, i32) {
    %c0_i32 = arith.constant 0 : i32
    %c0_i32_0 = arith.constant 0 : i32
    return %arg0, %c0_i32 : i32, i32
  }
  func.func @transform_3(%arg0: i32) -> (i32, i32) {
    %c0_i32 = arith.constant 0 : i32
    %c0_i32_0 = arith.constant 0 : i32
    return %c0_i32, %arg0 : i32, i32
  }
  func.func @transform_4(%arg0: i32) -> (i32, i32) {
    %c0_i32 = arith.constant 0 : i32
    %c0_i32_0 = arith.constant 0 : i32
    return %c0_i32, %arg0 : i32, i32
  }
}

</mosaic_0001>

<llo_original>
// kernel: tpu_custom_call.1
$region0: #{tpu_custom_call.1}
  #allocation0 [shape = 'u32[]', space=smem, size = 0x4, offset = 0x4, fixed_abs, tag = 'smem constant byte address 0x4 - core index']
  #allocation1 [shape = 'u32[144,128]{1,0:T(1,128)}', space=vmem, size = 0x12000, scoped, tag = 'internal scratch']
  %s0 = inlined_call_operand.hbm [shape: f32[1,32], index: 0, kind: input, shape index: {}]
  %s1 = inlined_call_operand.hbm [shape: f32[8,32], index: 1, kind: input, shape index: {}]
  %s2 = inlined_call_operand.hbm [shape: f32[8,32], index: 2, kind: input, shape index: {}]
  %s3 = inlined_call_operand.hbm [shape: f32[1,8], index: 3, kind: output, shape index: {0}]
  %s4 = inlined_call_operand.hbm [shape: f32[1,8], index: 4, kind: output, shape index: {1}]
  %5 = xla_tuple %s3, %s4
  %s6 = sld [smem:[#allocation0]]
  $region42: #{tpu_custom_call.1} parent=0
    _
  %s8 = ssub.s32 1, %s6
  %s9 = scalar_select 0, %s8, %s6
  $region1: #{tpu_custom_call.1} parent=0
    #allocation2 [shape = 'u8[512]{0}', space=vmem, size = 0x400, scoped, tag = 'input window, operand 0, single buffered']
    #allocation3 [shape = 's32[1]{0}', space=sflag, size = 0x4, scoped, tag = 'scoped memory for tpu_custom_call.1']
    #allocation4 [shape = 's32[1]{0}', space=sflag, size = 0x4, scoped, tag = 'scoped memory for tpu_custom_call.1']
    #allocation5 [shape = 'u8[4096]{0}', space=vmem, size = 0x1000, scoped, tag = 'input window, operand 1, single buffered']
    #allocation6 [shape = 's32[1]{0}', space=sflag, size = 0x4, scoped, tag = 'scoped memory for tpu_custom_call.1']
    #allocation7 [shape = 'u8[4096]{0}', space=vmem, size = 0x1000, scoped, tag = 'input window, operand 2, single buffered']
    #allocation8 [shape = 'u8[512]{0}', space=vmem, size = 0x400, scoped, tag = 'output window, operand 0, single buffered']
    #allocation9 [shape = 'u8[512]{0}', space=vmem, size = 0x400, scoped, tag = 'output window, operand 1, single buffered']
    #allocation10 [shape = 's32[1]{0}', space=sflag, size = 0x4, scoped, tag = 'scoped memory for tpu_custom_call.1']
    %10 = vsyncpa [#allocation3], 0
    %11 = vsyncpa [#allocation6], 0
    %12 = vsyncpa [#allocation4], 0
    %13 = vsyncpa [#allocation10], 0
    // Predicated region
    $region2: #{tpu_custom_call.1} parent=1 // pred_check
      _
    $region3: #{tpu_custom_call.1} parent=1 // pred_check_branch
      %15 = sbr.rel (0) target = $region5
    $region4: #{tpu_custom_call.1} parent=1 // pred_region
      %s17 = ssub.s32 16, 16
      %18 = vsyncadd [#allocation3], %s17
      %s20 = sshll.u32 [#allocation2], 4
      %s21 = int_to_ptr.vmem [resolvable:$true] %s20
      %23 = dma.hbm_to_vmem [thread:$0]  %s0, 16, %s21, [#allocation3]
    $region5: #{tpu_custom_call.1} parent=1 // pred_fallthru
      _
    // Predicated region
    $region6: #{tpu_custom_call.1} parent=1 // pred_check
      _
    $region7: #{tpu_custom_call.1} parent=1 // pred_check_branch
      %25 = sbr.rel (0) target = $region9
    $region8: #{tpu_custom_call.1} parent=1 // pred_region
      %s27 = ssub.s32 128, 128
      %28 = vsyncadd [#allocation6], %s27
      %s30 = sshll.u32 [#allocation5], 4
      %s31 = int_to_ptr.vmem [resolvable:$true] %s30
      %33 = dma.hbm_to_vmem [thread:$0]  %s1, 128, %s31, [#allocation6]
    $region9: #{tpu_custom_call.1} parent=1 // pred_fallthru
      _
    // Predicated region
    $region10: #{tpu_custom_call.1} parent=1 // pred_check
      _
    $region11: #{tpu_custom_call.1} parent=1 // pred_check_branch
      %35 = sbr.rel (0) target = $region13
    $region12: #{tpu_custom_call.1} parent=1 // pred_region
      %s37 = ssub.s32 128, 128
      %38 = vsyncadd [#allocation6], %s37
      %s40 = sshll.u32 [#allocation7], 4
      %s41 = int_to_ptr.vmem [resolvable:$true] %s40
      %43 = dma.hbm_to_vmem [thread:$0]  %s2, 128, %s41, [#allocation6]
    $region13: #{tpu_custom_call.1} parent=1 // pred_fallthru
      _
    // Predicated region
    $region14: #{tpu_custom_call.1} parent=1 // pred_check
      _
    $region15: #{tpu_custom_call.1} parent=1 // pred_check_branch
      %45 = sbr.rel (0) target = $region17
    $region16: #{tpu_custom_call.1} parent=1 // pred_region
      %46 = dma.done [#allocation3], 16
    $region17: #{tpu_custom_call.1} parent=1 // pred_fallthru
      _
    // Predicated region
    $region18: #{tpu_custom_call.1} parent=1 // pred_check
      _
    $region19: #{tpu_custom_call.1} parent=1 // pred_check_branch
      %48 = sbr.rel (0) target = $region21
    $region20: #{tpu_custom_call.1} parent=1 // pred_region
      %49 = dma.done [#allocation6], 128
    $region21: #{tpu_custom_call.1} parent=1 // pred_fallthru
      _
    // Predicated region
    $region22: #{tpu_custom_call.1} parent=1 // pred_check
      _
    $region23: #{tpu_custom_call.1} parent=1 // pred_check_branch
      %51 = sbr.rel (0) target = $region25
    $region24: #{tpu_custom_call.1} parent=1 // pred_region
      %52 = dma.done [#allocation6], 128
    $region25: #{tpu_custom_call.1} parent=1 // pred_fallthru
      _
    %v53 = vld [vmem:[#allocation2] sm:$0x1]
    %v54 = vld [vmem:[#allocation5] sm:$0xff]
    %vm55 = vcmask 261120
    %v57 = vsel %vm55, %v53, 0
    %v60 = vsel %vm55, %v54, 0
    %62 = vmatprep.subr.mxu0 0.0
    %63 = vmatpush1.xpose.msra.mxu0 %v60
    %64 = vmatprep.subr.mxu0 0.0
    %65 = vmatpush1.xpose.msra.mxu0 0.0
    %66 = vmatprep.subr.mxu0 0.0
    %67 = vmatpush1.xpose.msra.mxu0 0.0
    %68 = vmatprep.subr.mxu0 0.0
    %69 = vmatpush1.xpose.msra.mxu0 0.0
    %70 = vmatprep.subr.mxu0 0.0
    %71 = vmatpush1.xpose.msra.mxu0 0.0
    %72 = vmatprep.subr.mxu0 0.0
    %73 = vmatpush1.xpose.msra.mxu0 0.0
    %74 = vmatprep.subr.mxu0 0.0
    %75 = vmatpush1.xpose.msra.mxu0 0.0
    %76 = vmatprep.subr.mxu0 0.0
    %77 = vmatpush1.xpose.msra.mxu0 0.0
    %78 = vmatprep.subr.mxu0 0.0
    %79 = vmatpush1.xpose.msra.mxu0 0.0
    %80 = vmatprep.subr.mxu0 0.0
    %81 = vmatpush1.xpose.msra.mxu0 0.0
    %82 = vmatprep.subr.mxu0 0.0
    %83 = vmatpush1.xpose.msra.mxu0 0.0
    %84 = vmatprep.subr.mxu0 0.0
    %85 = vmatpush1.xpose.msra.mxu0 0.0
    %86 = vmatprep.subr.mxu0 0.0
    %87 = vmatpush1.xpose.msra.mxu0 0.0
    %88 = vmatprep.subr.mxu0 0.0
    %89 = vmatpush1.xpose.msra.mxu0 0.0
    %90 = vmatprep.subr.mxu0 0.0
    %91 = vmatpush1.xpose.msra.mxu0 0.0
    %92 = vmatprep.subr.mxu0 0.0
    %93 = vmatpush1.xpose.msra.mxu0 0.0
    %94 = vmatprep.subr.mxu0 0.0
    %95 = vmatpush1.xpose.msra.mxu0 0.0
    %96 = vmatprep.subr.mxu0 0.0
    %97 = vmatpush1.xpose.msra.mxu0 0.0
    %98 = vmatprep.subr.mxu0 0.0
    %99 = vmatpush1.xpose.msra.mxu0 0.0
    %100 = vmatprep.subr.mxu0 0.0
    %101 = vmatpush1.xpose.msra.mxu0 0.0
    %102 = vmatprep.subr.mxu0 0.0
    %103 = vmatpush1.xpose.msra.mxu0 0.0
    %104 = vmatprep.subr.mxu0 0.0
    %105 = vmatpush1.xpose.msra.mxu0 0.0
    %106 = vmatprep.subr.mxu0 0.0
    %107 = vmatpush1.xpose.msra.mxu0 0.0
    %108 = vmatprep.subr.mxu0 0.0
    %109 = vmatpush1.xpose.msra.mxu0 0.0
    %110 = vmatprep.subr.mxu0 0.0
    %111 = vmatpush1.xpose.msra.mxu0 0.0
    %112 = vmatprep.subr.mxu0 0.0
    %113 = vmatpush1.xpose.msra.mxu0 0.0
    %114 = vmatprep.subr.mxu0 0.0
    %115 = vmatpush1.xpose.msra.mxu0 0.0
    %116 = vmatprep.subr.mxu0 0.0
    %117 = vmatpush1.xpose.msra.mxu0 0.0
    %118 = vmatprep.subr.mxu0 0.0
    %119 = vmatpush1.xpose.msra.mxu0 0.0
    %120 = vmatprep.subr.mxu0 0.0
    %121 = vmatpush1.xpose.msra.mxu0 0.0
    %122 = vmatprep.subr.mxu0 0.0
    %123 = vmatpush1.xpose.msra.mxu0 0.0
    %124 = vmatprep.subr.mxu0 0.0
    %125 = vmatpush1.xpose.msra.mxu0 0.0
    %126 = vmatprep.mubr.f32.mxu0 0.0
    %127 = vmatmul.mubr.f32.gmra.mrb[0].mxu0 %v57
    %v128 = vpop.f32.mrb[0].mxu0
    %v129 = vadd.f32 0.0, %v128
    %v130 = vpop.f32.mrb[0].mxu0
    %131 = vdwg.mxu0
    %vm132 = vcmask 57344
    %133 = vst.msk [vmem:[#allocation8] sm:$0x1] %vm132, %v129
    %v134 = vld [vmem:[#allocation7] sm:$0xff]
    %v136 = vsel %vm55, %v134, 0
    %138 = vmatprep.subr.mxu0 0.0
    %139 = vmatpush1.xpose.msra.mxu0 %v136
    %140 = vmatprep.subr.mxu0 0.0
    %141 = vmatpush1.xpose.msra.mxu0 0.0
    %142 = vmatprep.subr.mxu0 0.0
    %143 = vmatpush1.xpose.msra.mxu0 0.0
    %144 = vmatprep.subr.mxu0 0.0
    %145 = vmatpush1.xpose.msra.mxu0 0.0
    %146 = vmatprep.subr.mxu0 0.0
    %147 = vmatpush1.xpose.msra.mxu0 0.0
    %148 = vmatprep.subr.mxu0 0.0
    %149 = vmatpush1.xpose.msra.mxu0 0.0
    %150 = vmatprep.subr.mxu0 0.0
    %151 = vmatpush1.xpose.msra.mxu0 0.0
    %152 = vmatprep.subr.mxu0 0.0
    %153 = vmatpush1.xpose.msra.mxu0 0.0
    %154 = vmatprep.subr.mxu0 0.0
    %155 = vmatpush1.xpose.msra.mxu0 0.0
    %156 = vmatprep.subr.mxu0 0.0
    %157 = vmatpush1.xpose.msra.mxu0 0.0
    %158 = vmatprep.subr.mxu0 0.0
    %159 = vmatpush1.xpose.msra.mxu0 0.0
    %160 = vmatprep.subr.mxu0 0.0
    %161 = vmatpush1.xpose.msra.mxu0 0.0
    %162 = vmatprep.subr.mxu0 0.0
    %163 = vmatpush1.xpose.msra.mxu0 0.0
    %164 = vmatprep.subr.mxu0 0.0
    %165 = vmatpush1.xpose.msra.mxu0 0.0
    %166 = vmatprep.subr.mxu0 0.0
    %167 = vmatpush1.xpose.msra.mxu0 0.0
    %168 = vmatprep.subr.mxu0 0.0
    %169 = vmatpush1.xpose.msra.mxu0 0.0
    %170 = vmatprep.subr.mxu0 0.0
    %171 = vmatpush1.xpose.msra.mxu0 0.0
    %172 = vmatprep.subr.mxu0 0.0
    %173 = vmatpush1.xpose.msra.mxu0 0.0
    %174 = vmatprep.subr.mxu0 0.0
    %175 = vmatpush1.xpose.msra.mxu0 0.0
    %176 = vmatprep.subr.mxu0 0.0
    %177 = vmatpush1.xpose.msra.mxu0 0.0
    %178 = vmatprep.subr.mxu0 0.0
    %179 = vmatpush1.xpose.msra.mxu0 0.0
    %180 = vmatprep.subr.mxu0 0.0
    %181 = vmatpush1.xpose.msra.mxu0 0.0
    %182 = vmatprep.subr.mxu0 0.0
    %183 = vmatpush1.xpose.msra.mxu0 0.0
    %184 = vmatprep.subr.mxu0 0.0
    %185 = vmatpush1.xpose.msra.mxu0 0.0
    %186 = vmatprep.subr.mxu0 0.0
    %187 = vmatpush1.xpose.msra.mxu0 0.0
    %188 = vmatprep.subr.mxu0 0.0
    %189 = vmatpush1.xpose.msra.mxu0 0.0
    %190 = vmatprep.subr.mxu0 0.0
    %191 = vmatpush1.xpose.msra.mxu0 0.0
    %192 = vmatprep.subr.mxu0 0.0
    %193 = vmatpush1.xpose.msra.mxu0 0.0
    %194 = vmatprep.subr.mxu0 0.0
    %195 = vmatpush1.xpose.msra.mxu0 0.0
    %196 = vmatprep.subr.mxu0 0.0
    %197 = vmatpush1.xpose.msra.mxu0 0.0
    %198 = vmatprep.subr.mxu0 0.0
    %199 = vmatpush1.xpose.msra.mxu0 0.0
    %200 = vmatprep.subr.mxu0 0.0
    %201 = vmatpush1.xpose.msra.mxu0 0.0
    %202 = vmatprep.mubr.f32.mxu0 0.0
    %203 = vmatmul.mubr.f32.gmra.mrb[0].mxu0 %v57
    %v204 = vpop.f32.mrb[0].mxu0
    %v205 = vadd.f32 0.0, %v204
    %v206 = vpop.f32.mrb[0].mxu0
    %207 = vdwg.mxu0
    %208 = vst.msk [vmem:[#allocation9] sm:$0x1] %vm132, %v205
    // Predicated region
    $region26: #{tpu_custom_call.1} parent=1 // pred_check
      _
    $region27: #{tpu_custom_call.1} parent=1 // pred_check_branch
      %210 = sbr.rel (0) target = $region29
    $region28: #{tpu_custom_call.1} parent=1 // pred_region
      %s212 = ssub.s32 16, 16
      %213 = vsyncadd [#allocation4], %s212
      %s215 = sshll.u32 [#allocation8], 4
      %s216 = int_to_ptr.vmem [resolvable:$true] %s215
      %218 = dma.vmem_to_hbm [thread:$0]  %s216, 16, %s3, [#allocation4]
    $region29: #{tpu_custom_call.1} parent=1 // pred_fallthru
      _
    // Predicated region
    $region30: #{tpu_custom_call.1} parent=1 // pred_check
      _
    $region31: #{tpu_custom_call.1} parent=1 // pred_check_branch
      %220 = sbr.rel (0) target = $region33
    $region32: #{tpu_custom_call.1} parent=1 // pred_region
      %s222 = ssub.s32 16, 16
      %223 = vsyncadd [#allocation10], %s222
      %s225 = sshll.u32 [#allocation9], 4
      %s226 = int_to_ptr.vmem [resolvable:$true] %s225
      %228 = dma.vmem_to_hbm [thread:$0]  %s226, 16, %s4, [#allocation10]
    $region33: #{tpu_custom_call.1} parent=1 // pred_fallthru
      _
    // Predicated region
    $region34: #{tpu_custom_call.1} parent=1 // pred_check
      _
    $region35: #{tpu_custom_call.1} parent=1 // pred_check_branch
      %230 = sbr.rel (0) target = $region37
    $region36: #{tpu_custom_call.1} parent=1 // pred_region
      %231 = dma.done [#allocation4], 16
    $region37: #{tpu_custom_call.1} parent=1 // pred_fallthru
      _
    // Predicated region
    $region38: #{tpu_custom_call.1} parent=1 // pred_check
      _
    $region39: #{tpu_custom_call.1} parent=1 // pred_check_branch
      %233 = sbr.rel (0) target = $region41
    $region40: #{tpu_custom_call.1} parent=1 // pred_region
      %234 = dma.done [#allocation10], 16
    $region41: #{tpu_custom_call.1} parent=1 // pred_fallthru
      _
    %235 = vsyncpa [#allocation3], 1
    %236 = vsyncpa [#allocation6], 1
    %237 = vsyncpa [#allocation4], 1
    %238 = vsyncpa [#allocation10], 1

</llo_original>
